<compile_context>
chip_gen: v6e
topology: v6e:2x2x1
jax: 0.10.0
libtpu: 0.0.40
codegen_flags: <defaults>
</compile_context>

<pallas_src>
import functools

import jax
import jax.numpy as jnp
from jax.experimental import pallas as pl
from jax.experimental.pallas import tpu as pltpu


_SMALL_K = 8              # contractions with d_in <= this use VPU broadcast-MACs
_DEFAULT_MAX_TILE = 2048  # sweep 1024/2048/4096 on hardware; 2048 keeps vreg/VMEM
                          # pressure sane on every generation (incl. v7x 64 MiB)


def _round_up(x, m):
    return ((x + m - 1) // m) * m


def _layer_mode(d_in, d_out):
    """How one Linear layer is computed inside the kernel."""
    if d_out == 1:
        return "reduce"   # PINN scalar head: VPU mul + XLU sublane-reduce, w passed (d_in, 1)
    if d_in <= _SMALL_K:
        return "vpu"      # tiny contraction: broadcast MACs beat an almost-empty MXU pass
    return "mxu"          # real MXU matmul, f32 accumulation


def _pick_batch_tile(batch, max_tile):
    """Lane-dense batch tile.

    - multiple of 128 (lane-dense loads/stores, legal edge blocks),
    - >=2 grid steps whenever batch > 128 (so v7x megacore can use both TCs),
    - capped at `max_tile`, never larger than the batch itself.
    """
    if batch <= 128:
        return batch                      # one full-extent block; always legal
    tile = min(max_tile, _round_up(-(-batch // 2), 128))
    return max(128, tile)


def _fused_mlp_kernel(x_ref, *refs, layers, batch, batch_tile, use_bf16):
    """Fused MLP on one (features, batch_tile) activation slab.

    refs = (w0, b0, w1, b1, ..., w_{L-1}, b_{L-1}, o_ref)
    w_l : (d_out_l, d_in_l) torch layout, EXCEPT d_out_l == 1 layers which are
          passed pre-transposed as (d_in_l, 1) for the reduce path.
    b_l : (d_out_l, 1)  -> broadcasts across the 128-lane (batch) axis.
    """
    o_ref = refs[-1]
    wb = refs[:-1]
    num_layers = len(layers) - 1

    # (d_in0, T): batch rides the 128-lane axis -> every load/store is lane-dense.
    a = x_ref[...]

    if batch % batch_tile != 0:
        # Ragged edge block (no wrapper-side padding): columns past `batch` hold
        # uninitialized VMEM.  Zero them so SiLU/exp see finite values; Pallas
        # drops their writeback, and columns are independent, so this is purely
        # defensive.
        valid = batch - pl.program_id(0) * batch_tile
        cols = jax.lax.broadcasted_iota(jnp.int32, a.shape, 1)
        a = jnp.where(cols < valid, a, 0.0)

    for l in range(num_layers):
        d_in, d_out = layers[l], layers[l + 1]
        w = wb[2 * l][...]
        b = wb[2 * l + 1][...]            # (d_out, 1): lane broadcast

        mode = _layer_mode(d_in, d_out)
        if mode == "reduce":
            # d_out == 1: elementwise VPU multiply + XLU sublane reduce instead
            # of an M=1 MXU pass.  w is (d_in, 1) here.
            y = jnp.sum(w * a, axis=0, keepdims=True) + b
        elif mode == "vpu":
            # Tiny contraction dim (the (t, x0) input layer): a couple of
            # broadcast MACs instead of a nearly empty MXU pass.
            y = w[:, 0:1] * a[0:1, :]
            for k in range(1, d_in):
                y = y + w[:, k:k + 1] * a[k:k + 1, :]
            y = y + b
        else:
            # MXU matmul with f32 accumulation; N = batch_tile lanes are dense.
            # Optional bf16 inputs cut vmatmul pushes ~3x once the MXU slot
            # (not per-step overhead) is the binding resource.
            lhs, rhs = w, a
            if use_bf16:
                lhs = lhs.astype(jnp.bfloat16)
                rhs = rhs.astype(jnp.bfloat16)
            y = jnp.dot(lhs, rhs, preferred_element_type=jnp.float32) + b

        if l < num_layers - 1:
            # SiLU(x) = x * sigmoid(x); the exp/recip run on the EUP slot.
            y = y * jax.nn.sigmoid(y)
        a = y

    o_ref[...] = a.astype(o_ref.dtype)


def feedforward_nn_colmajor(x_cm, params, *, max_batch_tile=_DEFAULT_MAX_TILE,
                            use_bf16_matmul=False):
    """Zero-copy entry point: y_cm = MLP(x) in feature-major layout.

    x_cm   : (layers[0], batch) float32 -- batch on the last (lane) axis.
    params : [(W(out,in), b(out,)), ...] torch nn.Linear layout.
    returns: (layers[-1], batch) float32.

    No wrapper-side transpose or padding: the kernel reads/writes lane-dense
    HBM slabs directly.  Preferred inside a PINN training loop (keep the
    collocation points stored feature-major).
    """
    d_in0, batch = x_cm.shape
    layer_dims = (d_in0,) + tuple(w.shape[0] for w, _ in params)
    d_out_last = layer_dims[-1]

    batch_tile = _pick_batch_tile(batch, max_batch_tile)
    grid = (pl.cdiv(batch, batch_tile),)

    # Flatten params; biases reshaped to (d_out, 1) for lane broadcast; the
    # d_out == 1 head weight is pre-transposed to (d_in, 1) for the reduce path.
    flat_inputs, wb_specs = [], []
    for (w, b), d_in_l, d_out_l in zip(params, layer_dims[:-1], layer_dims[1:]):
        assert w.shape == (d_out_l, d_in_l) and b.shape == (d_out_l,)
        mode = _layer_mode(d_in_l, d_out_l)
        w_in = w.T if mode == "reduce" else w
        flat_inputs += [w_in, b.reshape(d_out_l, 1)]
        # Full-array blocks + constant index_map -> fetched once and VMEM-resident
        # for the whole batch grid (Pallas skips re-DMA when the block index
        # repeats); only cheap per-step bookkeeping remains.
        wb_specs += [pl.BlockSpec(w_in.shape, lambda i: (0, 0)),
                     pl.BlockSpec((d_out_l, 1), lambda i: (0, 0))]

    kernel = functools.partial(
        _fused_mlp_kernel, layers=layer_dims, batch=batch,
        batch_tile=batch_tile, use_bf16=use_bf16_matmul)

    return pl.pallas_call(
        kernel,
        out_shape=jax.ShapeDtypeStruct((d_out_last, batch), x_cm.dtype),
        grid_spec=pl.GridSpec(
            grid=grid,
            in_specs=[pl.BlockSpec((d_in0, batch_tile), lambda i: (0, i))] + wb_specs,
            out_specs=pl.BlockSpec((d_out_last, batch_tile), lambda i: (0, i)),
        ),
        # Disjoint output tile per step -> "parallel" lets v7x megacore shard the
        # batch grid across both TensorCores.  VMEM use at tile<=2048 is far below
        # the default scoped limit on every generation (v5e included), so no
        # vmem_limit_bytes override is needed.
        compiler_params=pltpu.CompilerParams(dimension_semantics=("parallel",)),
    )(x_cm, *flat_inputs)


def feedforward_nn(x, params, *, max_batch_tile=_DEFAULT_MAX_TILE,
                   use_bf16_matmul=False):
    """Drop-in torch-layout forward: x (batch, layers[0]) -> (batch, layers[-1]).

    The kernel works in the lane-dense (features, batch) layout; this
    convenience wrapper pays exactly one small transpose of x (and one of y,
    which is free when layers[-1] == 1).  For zero wrapper copies, call
    feedforward_nn_colmajor with feature-major inputs.
    """
    y_cm = feedforward_nn_colmajor(x.T, params, max_batch_tile=max_batch_tile,
                                   use_bf16_matmul=use_bf16_matmul)
    return y_cm.T


def init_params(layers, key):
    """nn.Linear-style init: W is (out, in), uniform +-1/sqrt(fan_in)."""
    params = []
    for i in range(len(layers) - 1):
        fan_in, fan_out = layers[i], layers[i + 1]
        key, kw, kb = jax.random.split(key, 3)
        bound = 1.0 / jnp.sqrt(jnp.float32(fan_in))
        w = jax.random.uniform(kw, (fan_out, fan_in), jnp.float32, -bound, bound)
        b = jax.random.uniform(kb, (fan_out,), jnp.float32, -bound, bound)
        params.append((w, b))
    return params


def feedforward_nn_ref(x, params):
    """Pure-JAX reference (torch layout: y = x @ W.T + b, SiLU between layers)."""
    n = len(params)
    for idx, (w, b) in enumerate(params):
        x = x @ w.T + b
        if idx < n - 1:
            x = x * jax.nn.sigmoid(x)
    return x


if __name__ == "__main__":
    # Typical PINN IVP net: input dim 2 (t, x0), two hidden layers of 32, scalar out.
    layers = [2, 32, 32, 1]

    key = jax.random.PRNGKey(0)
    key, kp = jax.random.split(key)
    params = init_params(layers, kp)

    # batch=8   : single full-extent block (tile == batch).
    # batch=300 : ragged 2-step grid (exercises in-kernel edge masking).
    # batch=2048: two 1024-wide lane-dense tiles (megacore-friendly grid >= 2).
    for batch in (8, 300, 2048):
        key, kx = jax.random.split(key)
        x = jax.random.normal(kx, (batch, layers[0]), dtype=jnp.float32)
        y_ref = feedforward_nn_ref(x, params)

        # Torch-layout convenience wrapper.
        y = jax.block_until_ready(feedforward_nn(x, params))
        assert y.shape == (batch, layers[-1])
        assert jnp.allclose(y, y_ref, atol=1e-5, rtol=1e-5)

        # Zero-copy column-major entry point (preferred inside a PINN loop).
        y_cm = jax.block_until_ready(feedforward_nn_colmajor(x.T, params))
        assert y_cm.shape == (layers[-1], batch)
        assert jnp.allclose(y_cm.T, y_ref, atol=1e-5, rtol=1e-5)

    print("KERNEL_OK")
</pallas_src>

<mosaic_0001>
module attributes {stable_mosaic.version = 11 : i64} {
  func.func @_fused_mlp_kernel(%arg0: i32, %arg1: memref<2x8xf32, #tpu.memory_space<vmem>>, %arg2: memref<32x2xf32, #tpu.memory_space<vmem>>, %arg3: memref<32x1xf32, #tpu.memory_space<vmem>>, %arg4: memref<32x32xf32, #tpu.memory_space<vmem>>, %arg5: memref<32x1xf32, #tpu.memory_space<vmem>>, %arg6: memref<32x1xf32, #tpu.memory_space<vmem>>, %arg7: memref<1x1xf32, #tpu.memory_space<vmem>>, %arg8: memref<1x8xf32, #tpu.memory_space<vmem>>) attributes {dimension_semantics = [#tpu.dimension_semantics<parallel>], iteration_bounds = array<i64: 1>, scalar_prefetch = 0 : i64, scratch_operands = 0 : i64, tpu.core_type = #tpu.core_type<tc>, window_params = [{transform_indices = @transform_0, window_bounds = array<i64: 2, 8>}, {pipeline_mode = #tpu.pipeline_mode<synchronous>, transform_indices = @transform_1, window_bounds = array<i64: 32, 2>}, {pipeline_mode = #tpu.pipeline_mode<synchronous>, transform_indices = @transform_2, window_bounds = array<i64: 32, 1>}, {pipeline_mode = #tpu.pipeline_mode<synchronous>, transform_indices = @transform_3, window_bounds = array<i64: 32, 32>}, {pipeline_mode = #tpu.pipeline_mode<synchronous>, transform_indices = @transform_4, window_bounds = array<i64: 32, 1>}, {pipeline_mode = #tpu.pipeline_mode<synchronous>, transform_indices = @transform_5, window_bounds = array<i64: 32, 1>}, {pipeline_mode = #tpu.pipeline_mode<synchronous>, transform_indices = @transform_6, window_bounds = array<i64: 1, 1>}, {transform_indices = @transform_7, window_bounds = array<i64: 1, 8>}]} {
    %c0 = arith.constant 0 : index
    %c0_0 = arith.constant 0 : index
    %0 = vector.load %arg1[%c0, %c0_0] : memref<2x8xf32, #tpu.memory_space<vmem>>, vector<2x8xf32>
    %c0_1 = arith.constant 0 : index
    %c0_2 = arith.constant 0 : index
    %1 = vector.load %arg2[%c0_1, %c0_2] : memref<32x2xf32, #tpu.memory_space<vmem>>, vector<32x2xf32>
    %c0_3 = arith.constant 0 : index
    %c0_4 = arith.constant 0 : index
    %2 = vector.load %arg3[%c0_3, %c0_4] : memref<32x1xf32, #tpu.memory_space<vmem>>, vector<32x1xf32>
    %3 = vector.extract_strided_slice %1 {offsets = [0, 0], sizes = [32, 1], strides = [1, 1]} : vector<32x2xf32> to vector<32x1xf32>
    %4 = vector.extract_strided_slice %0 {offsets = [0, 0], sizes = [1, 8], strides = [1, 1]} : vector<2x8xf32> to vector<1x8xf32>
    %5 = vector.broadcast %3 : vector<32x1xf32> to vector<32x8xf32>
    %6 = vector.broadcast %4 : vector<1x8xf32> to vector<32x8xf32>
    %7 = arith.mulf %5, %6 : vector<32x8xf32>
    %8 = vector.extract_strided_slice %1 {offsets = [0, 1], sizes = [32, 1], strides = [1, 1]} : vector<32x2xf32> to vector<32x1xf32>
    %9 = vector.extract_strided_slice %0 {offsets = [1, 0], sizes = [1, 8], strides = [1, 1]} : vector<2x8xf32> to vector<1x8xf32>
    %10 = vector.broadcast %8 : vector<32x1xf32> to vector<32x8xf32>
    %11 = vector.broadcast %9 : vector<1x8xf32> to vector<32x8xf32>
    %12 = arith.mulf %10, %11 : vector<32x8xf32>
    %13 = arith.addf %7, %12 : vector<32x8xf32>
    %14 = vector.broadcast %2 : vector<32x1xf32> to vector<32x8xf32>
    %15 = arith.addf %13, %14 : vector<32x8xf32>
    %16 = arith.negf %15 : vector<32x8xf32>
    %17 = math.exp %16 : vector<32x8xf32>
    %cst = arith.constant 1.000000e+00 : f32
    %18 = vector.broadcast %cst : f32 to vector<32x8xf32>
    %19 = arith.addf %18, %17 : vector<32x8xf32>
    %20 = arith.divf %18, %19 : vector<32x8xf32>
    %21 = arith.mulf %15, %20 : vector<32x8xf32>
    %c0_5 = arith.constant 0 : index
    %c0_6 = arith.constant 0 : index
    %22 = vector.load %arg4[%c0_5, %c0_6] : memref<32x32xf32, #tpu.memory_space<vmem>>, vector<32x32xf32>
    %c0_7 = arith.constant 0 : index
    %c0_8 = arith.constant 0 : index
    %23 = vector.load %arg5[%c0_7, %c0_8] : memref<32x1xf32, #tpu.memory_space<vmem>>, vector<32x1xf32>
    %cst_9 = arith.constant dense<0.000000e+00> : vector<32x8xf32>
    %24 = tpu.matmul %22, %21, %cst_9 {dimension_numbers = #tpu.dot_dimension_numbers<[1], [0], [0], [1], [0, 0, 1, 1], [], []>} : vector<32x32xf32>, vector<32x8xf32>, vector<32x8xf32> -> vector<32x8xf32>
    %25 = vector.broadcast %23 : vector<32x1xf32> to vector<32x8xf32>
    %26 = arith.addf %24, %25 : vector<32x8xf32>
    %27 = arith.negf %26 : vector<32x8xf32>
    %28 = math.exp %27 : vector<32x8xf32>
    %cst_10 = arith.constant 1.000000e+00 : f32
    %29 = vector.broadcast %cst_10 : f32 to vector<32x8xf32>
    %30 = arith.addf %29, %28 : vector<32x8xf32>
    %31 = arith.divf %29, %30 : vector<32x8xf32>
    %32 = arith.mulf %26, %31 : vector<32x8xf32>
    %c0_11 = arith.constant 0 : index
    %c0_12 = arith.constant 0 : index
    %33 = vector.load %arg6[%c0_11, %c0_12] : memref<32x1xf32, #tpu.memory_space<vmem>>, vector<32x1xf32>
    %c0_13 = arith.constant 0 : index
    %c0_14 = arith.constant 0 : index
    %34 = vector.load %arg7[%c0_13, %c0_14] : memref<1x1xf32, #tpu.memory_space<vmem>>, vector<1x1xf32>
    %35 = vector.broadcast %33 : vector<32x1xf32> to vector<32x8xf32>
    %36 = arith.mulf %35, %32 : vector<32x8xf32>
    %cst_15 = arith.constant dense<0.000000e+00> : vector<8xf32>
    %37 = vector.multi_reduction <add>, %36, %cst_15 [0] : vector<32x8xf32> to vector<8xf32>
    %38 = vector.shape_cast %37 : vector<8xf32> to vector<1x8xf32>
    %39 = vector.broadcast %34 : vector<1x1xf32> to vector<1x8xf32>
    %40 = arith.addf %38, %39 : vector<1x8xf32>
    %c0_16 = arith.constant 0 : index
    %c0_17 = arith.constant 0 : index
    %41 = vector.load %arg8[%c0_16, %c0_17] : memref<1x8xf32, #tpu.memory_space<vmem>>, vector<1x8xf32>
    tpu.vector_store %arg8[%c0_16, %c0_17], %40 {strides = array<i32>} : memref<1x8xf32, #tpu.memory_space<vmem>>, vector<1x8xf32>,
    return
  }
  func.func @transform_0(%arg0: i32) -> (i32, i32) {
    %c0_i32 = arith.constant 0 : i32
    %c0_i32_0 = arith.constant 0 : i32
    return %c0_i32, %arg0 : i32, i32
  }
  func.func @transform_1(%arg0: i32) -> (i32, i32) {
    %c0_i32 = arith.constant 0 : i32
    %c0_i32_0 = arith.constant 0 : i32
    %c0_i32_1 = arith.constant 0 : i32
    return %c0_i32, %c0_i32_0 : i32, i32
  }
  func.func @transform_2(%arg0: i32) -> (i32, i32) {
    %c0_i32 = arith.constant 0 : i32
    %c0_i32_0 = arith.constant 0 : i32
    %c0_i32_1 = arith.constant 0 : i32
    return %c0_i32, %c0_i32_0 : i32, i32
  }
  func.func @transform_3(%arg0: i32) -> (i32, i32) {
    %c0_i32 = arith.constant 0 : i32
    %c0_i32_0 = arith.constant 0 : i32
    %c0_i32_1 = arith.constant 0 : i32
    return %c0_i32, %c0_i32_0 : i32, i32
  }
  func.func @transform_4(%arg0: i32) -> (i32, i32) {
    %c0_i32 = arith.constant 0 : i32
    %c0_i32_0 = arith.constant 0 : i32
    %c0_i32_1 = arith.constant 0 : i32
    return %c0_i32, %c0_i32_0 : i32, i32
  }
  func.func @transform_5(%arg0: i32) -> (i32, i32) {
    %c0_i32 = arith.constant 0 : i32
    %c0_i32_0 = arith.constant 0 : i32
    %c0_i32_1 = arith.constant 0 : i32
    return %c0_i32, %c0_i32_0 : i32, i32
  }
  func.func @transform_6(%arg0: i32) -> (i32, i32) {
    %c0_i32 = arith.constant 0 : i32
    %c0_i32_0 = arith.constant 0 : i32
    %c0_i32_1 = arith.constant 0 : i32
    return %c0_i32, %c0_i32_0 : i32, i32
  }
  func.func @transform_7(%arg0: i32) -> (i32, i32) {
    %c0_i32 = arith.constant 0 : i32
    %c0_i32_0 = arith.constant 0 : i32
    return %c0_i32, %arg0 : i32, i32
  }
}

</mosaic_0001>

<llo_original>
// kernel: tpu_custom_call.1
$region0: #{tpu_custom_call.1}
  #allocation0 [shape = 'u32[]', space=smem, size = 0x4, offset = 0x4, fixed_abs, tag = 'smem constant byte address 0x4 - core index']
  #allocation1 [shape = 'u32[144,128]{1,0:T(1,128)}', space=vmem, size = 0x12000, scoped, tag = 'internal scratch']
  #allocation2 [shape = 'f32[1,1]{1,0:T(1,128)S(1)}', space=vmem, size = 0x200, scoped, tag = 'scoped memory for tpu_custom_call.1']
  %s0 = inlined_call_operand.vmem [shape: f32[2,8], index: 0, kind: input, shape index: {}]
  %s1 = inlined_call_operand.vmem [shape: f32[32,2], index: 1, kind: input, shape index: {}]
  %s2 = inlined_call_operand.vmem [shape: f32[32,1], index: 2, kind: input, shape index: {}]
  %s3 = inlined_call_operand.vmem [shape: f32[32,32], index: 3, kind: input, shape index: {}]
  %s4 = inlined_call_operand.vmem [shape: f32[32,1], index: 4, kind: input, shape index: {}]
  %s5 = inlined_call_operand.vmem [shape: f32[32,1], index: 5, kind: input, shape index: {}]
  %s6 = inlined_call_operand.<no memory space> [shape: f32[1,1], index: 6, kind: input, shape index: {}]
  %s7 = inlined_call_operand.hbm [shape: f32[1,8], index: 7, kind: output, shape index: {}]
  %s8 = sld [smem:[#allocation0]]
  $region38: #{tpu_custom_call.1} parent=0
    _
  %s10 = ssub.s32 1, %s8
  %s11 = scalar_select 0, %s10, %s8
  %v12 = vstv %s6
  %13 = vst [vmem:[#allocation2] sm:$0x1] %v12
  $region1: #{tpu_custom_call.1} parent=0
    #allocation3 [shape = 'u8[512]{0}', space=vmem, size = 0x400, scoped, tag = 'output window, operand 0, single buffered']
    #allocation4 [shape = 's32[1]{0}', space=sflag, size = 0x4, scoped, tag = 'scoped memory for tpu_custom_call.1']
    %14 = vsyncpa [#allocation4], 0
    // Predicated region
    $region2: #{tpu_custom_call.1} parent=1 // pred_check
      _
    $region3: #{tpu_custom_call.1} parent=1 // pred_check_branch
      %16 = sbr.rel (0) target = $region5
    $region4: #{tpu_custom_call.1} parent=1 // pred_region
      _
    $region5: #{tpu_custom_call.1} parent=1 // pred_fallthru
      _
    // Predicated region
    $region6: #{tpu_custom_call.1} parent=1 // pred_check
      _
    $region7: #{tpu_custom_call.1} parent=1 // pred_check_branch
      %18 = sbr.rel (0) target = $region9
    $region8: #{tpu_custom_call.1} parent=1 // pred_region
      _
    $region9: #{tpu_custom_call.1} parent=1 // pred_fallthru
      _
    // Predicated region
    $region10: #{tpu_custom_call.1} parent=1 // pred_check
      _
    $region11: #{tpu_custom_call.1} parent=1 // pred_check_branch
      %20 = sbr.rel (0) target = $region13
    $region12: #{tpu_custom_call.1} parent=1 // pred_region
      _
    $region13: #{tpu_custom_call.1} parent=1 // pred_fallthru
      _
    // Predicated region
    $region14: #{tpu_custom_call.1} parent=1 // pred_check
      _
    $region15: #{tpu_custom_call.1} parent=1 // pred_check_branch
      %22 = sbr.rel (0) target = $region17
    $region16: #{tpu_custom_call.1} parent=1 // pred_region
      _
    $region17: #{tpu_custom_call.1} parent=1 // pred_fallthru
      _
    // Predicated region
    $region18: #{tpu_custom_call.1} parent=1 // pred_check
      _
    $region19: #{tpu_custom_call.1} parent=1 // pred_check_branch
      %24 = sbr.rel (0) target = $region21
    $region20: #{tpu_custom_call.1} parent=1 // pred_region
      _
    $region21: #{tpu_custom_call.1} parent=1 // pred_fallthru
      _
    // Predicated region
    $region22: #{tpu_custom_call.1} parent=1 // pred_check
      _
    $region23: #{tpu_custom_call.1} parent=1 // pred_check_branch
      %26 = sbr.rel (0) target = $region25
    $region24: #{tpu_custom_call.1} parent=1 // pred_region
      _
    $region25: #{tpu_custom_call.1} parent=1 // pred_fallthru
      _
    // Predicated region
    $region26: #{tpu_custom_call.1} parent=1 // pred_check
      _
    $region27: #{tpu_custom_call.1} parent=1 // pred_check_branch
      %28 = sbr.rel (0) target = $region29
    $region28: #{tpu_custom_call.1} parent=1 // pred_region
      _
    $region29: #{tpu_custom_call.1} parent=1 // pred_fallthru
      _
    %v29 = vld [vmem:[%s0] sm:$0x3]
    %v30 = vld [vmem:[%s1] sm:$0xff]
    %v31 = vld [vmem:[%s1 + $0x8] sm:$0xff]
    %v32 = vld [vmem:[%s1 + $0x10] sm:$0xff]
    %v33 = vld [vmem:[%s1 + $0x18] sm:$0xff]
    %v34 = vld [vmem:[%s2] sm:$0xff]
    %v35 = vld [vmem:[%s2 + $0x8] sm:$0xff]
    %v36 = vld [vmem:[%s2 + $0x10] sm:$0xff]
    %v37 = vld [vmem:[%s2 + $0x18] sm:$0xff]
    %39 = vset.pattern.permute.xlu0 0
    %40 = vperm.xlu0 %39, %v30
    %v41 = vpop.permute.xlu0 %40
    %44 = vset.pattern.permute.xlu0 0
    %45 = vperm.xlu0 %44, %v31
    %v46 = vpop.permute.xlu0 %45
    %49 = vset.pattern.permute.xlu0 0
    %50 = vperm.xlu0 %49, %v32
    %v51 = vpop.permute.xlu0 %50
    %54 = vset.pattern.permute.xlu0 0
    %55 = vperm.xlu0 %54, %v33
    %v56 = vpop.permute.xlu0 %55
    %v58 = vlaneseq
    %v59 = vshrl.u32 %v58, 7
    %v60 = vsub.s32 0, %v59
    %v61 = vrot.slane %v29, %v60
    %v62 = vmul.f32 %v41, %v61
    %v63 = vmul.f32 %v46, %v61
    %v64 = vmul.f32 %v51, %v61
    %v65 = vmul.f32 %v56, %v61
    %66 = vset.pattern.permute.xlu0 1
    %67 = vperm.xlu0 %66, %v30
    %v68 = vpop.permute.xlu0 %67
    %70 = vset.pattern.permute.xlu0 1
    %71 = vperm.xlu0 %70, %v31
    %v72 = vpop.permute.xlu0 %71
    %74 = vset.pattern.permute.xlu0 1
    %75 = vperm.xlu0 %74, %v32
    %v76 = vpop.permute.xlu0 %75
    %78 = vset.pattern.permute.xlu0 1
    %79 = vperm.xlu0 %78, %v33
    %v80 = vpop.permute.xlu0 %79
    %v82 = vlaneseq
    %v83 = vshrl.u32 %v82, 7
    %v84 = vsub.s32 1, %v83
    %v85 = vrot.slane %v29, %v84
    %v86 = vmul.f32 %v68, %v85
    %v87 = vmul.f32 %v72, %v85
    %v88 = vmul.f32 %v76, %v85
    %v89 = vmul.f32 %v80, %v85
    %v90 = vadd.f32 %v62, %v86
    %v91 = vadd.f32 %v63, %v87
    %v92 = vadd.f32 %v64, %v88
    %v93 = vadd.f32 %v65, %v89
    %95 = vset.pattern.permute.xlu0 0
    %96 = vperm.xlu0 %95, %v34
    %v97 = vpop.permute.xlu0 %96
    %100 = vset.pattern.permute.xlu0 0
    %101 = vperm.xlu0 %100, %v35
    %v102 = vpop.permute.xlu0 %101
    %105 = vset.pattern.permute.xlu0 0
    %106 = vperm.xlu0 %105, %v36
    %v107 = vpop.permute.xlu0 %106
    %110 = vset.pattern.permute.xlu0 0
    %111 = vperm.xlu0 %110, %v37
    %v112 = vpop.permute.xlu0 %111
    %v114 = vadd.f32 %v90, %v97
    %v115 = vadd.f32 %v91, %v102
    %v116 = vadd.f32 %v92, %v107
    %v117 = vadd.f32 %v93, %v112
    %v118 = vxor.u32 %v114, 2147483648
    %v119 = vxor.u32 %v115, 2147483648
    %v120 = vxor.u32 %v116, 2147483648
    %v121 = vxor.u32 %v117, 2147483648
    %v122 = vmul.f32 %v118, 1.442695
    %v123 = vpow.pop %v122
    %v124 = vmul.f32 %v119, 1.442695
    %v125 = vpow.pop %v124
    %v126 = vmul.f32 %v120, 1.442695
    %v127 = vpow.pop %v126
    %v128 = vmul.f32 %v121, 1.442695
    %v129 = vpow.pop %v128
    %v130 = vadd.f32 %v123, 1.0
    %v131 = vadd.f32 %v125, 1.0
    %v132 = vadd.f32 %v127, 1.0
    %v133 = vadd.f32 %v129, 1.0
    %v134 = vrcp.pop %v130
    %v135 = vmul.f32 1.0, %v134
    %v136 = vrcp.pop %v131
    %v137 = vmul.f32 1.0, %v136
    %v138 = vrcp.pop %v132
    %v139 = vmul.f32 1.0, %v138
    %v140 = vrcp.pop %v133
    %v141 = vmul.f32 1.0, %v140
    %v142 = vmul.f32 %v114, %v135
    %v143 = vmul.f32 %v115, %v137
    %v144 = vmul.f32 %v116, %v139
    %v145 = vmul.f32 %v117, %v141
    %v146 = vld [vmem:[%s3] sm:$0xff]
    %v147 = vld [vmem:[%s3 + $0x8] sm:$0xff]
    %v148 = vld [vmem:[%s3 + $0x10] sm:$0xff]
    %v149 = vld [vmem:[%s3 + $0x18] sm:$0xff]
    %v150 = vld [vmem:[%s4] sm:$0xff]
    %v151 = vld [vmem:[%s4 + $0x8] sm:$0xff]
    %v152 = vld [vmem:[%s4 + $0x10] sm:$0xff]
    %v153 = vld [vmem:[%s4 + $0x18] sm:$0xff]
    %155 = vset.pattern.permute.xlu0 0
    %156 = vperm.xlu0 %155, %v150
    %v157 = vpop.permute.xlu0 %156
    %160 = vset.pattern.permute.xlu0 0
    %161 = vperm.xlu0 %160, %v151
    %v162 = vpop.permute.xlu0 %161
    %165 = vset.pattern.permute.xlu0 0
    %166 = vperm.xlu0 %165, %v152
    %v167 = vpop.permute.xlu0 %166
    %170 = vset.pattern.permute.xlu0 0
    %171 = vperm.xlu0 %170, %v153
    %v172 = vpop.permute.xlu0 %171
    %vm174 = vcmask 261120
    %v176 = vsel %vm174, %v146, 0
    %v179 = vsel %vm174, %v147, 0
    %v182 = vsel %vm174, %v148, 0
    %v185 = vsel %vm174, %v149, 0
    %187 = vmatprep.subr.mxu0 0.0
    %188 = vmatpush1.msra.mxu0 0.0
    %189 = vmatprep.subr.mxu0 0.0
    %190 = vmatpush1.msra.mxu0 0.0
    %191 = vmatprep.subr.mxu0 0.0
    %192 = vmatpush1.msra.mxu0 0.0
    %193 = vmatprep.subr.mxu0 0.0
    %194 = vmatpush1.msra.mxu0 0.0
    %195 = vmatprep.subr.mxu0 0.0
    %196 = vmatpush1.msra.mxu0 0.0
    %197 = vmatprep.subr.mxu0 0.0
    %198 = vmatpush1.msra.mxu0 0.0
    %199 = vmatprep.subr.mxu0 0.0
    %200 = vmatpush1.msra.mxu0 0.0
    %201 = vmatprep.subr.mxu0 0.0
    %202 = vmatpush1.msra.mxu0 0.0
    %203 = vmatprep.subr.mxu0 0.0
    %204 = vmatpush1.msra.mxu0 0.0
    %205 = vmatprep.subr.mxu0 0.0
    %206 = vmatpush1.msra.mxu0 0.0
    %207 = vmatprep.subr.mxu0 0.0
    %208 = vmatpush1.msra.mxu0 0.0
    %209 = vmatprep.subr.mxu0 0.0
    %210 = vmatpush1.msra.mxu0 0.0
    %211 = vmatprep.subr.mxu0 0.0
    %212 = vmatpush1.msra.mxu0 %v145
    %213 = vmatprep.subr.mxu0 0.0
    %214 = vmatpush1.msra.mxu0 %v144
    %215 = vmatprep.subr.mxu0 0.0
    %216 = vmatpush1.msra.mxu0 %v143
    %217 = vmatprep.subr.mxu0 0.0
    %218 = vmatpush1.msra.mxu0 %v142
    %219 = vmatprep.subr.mxu0 0.0
    %220 = vmatpush2.msra.mxu0 0.0
    %221 = vmatprep.subr.mxu0 0.0
    %222 = vmatpush2.msra.mxu0 0.0
    %223 = vmatprep.subr.mxu0 0.0
    %224 = vmatpush2.msra.mxu0 0.0
    %225 = vmatprep.subr.mxu0 0.0
    %226 = vmatpush2.msra.mxu0 0.0
    %227 = vmatprep.subr.mxu0 0.0
    %228 = vmatpush2.msra.mxu0 0.0
    %229 = vmatprep.subr.mxu0 0.0
    %230 = vmatpush2.msra.mxu0 0.0
    %231 = vmatprep.subr.mxu0 0.0
    %232 = vmatpush2.msra.mxu0 0.0
    %233 = vmatprep.subr.mxu0 0.0
    %234 = vmatpush2.msra.mxu0 0.0
    %235 = vmatprep.subr.mxu0 0.0
    %236 = vmatpush2.msra.mxu0 0.0
    %237 = vmatprep.subr.mxu0 0.0
    %238 = vmatpush2.msra.mxu0 0.0
    %239 = vmatprep.subr.mxu0 0.0
    %240 = vmatpush2.msra.mxu0 0.0
    %241 = vmatprep.subr.mxu0 0.0
    %242 = vmatpush2.msra.mxu0 0.0
    %243 = vmatprep.subr.mxu0 0.0
    %244 = vmatpush2.msra.mxu0 0.0
    %245 = vmatprep.subr.mxu0 0.0
    %246 = vmatpush2.msra.mxu0 0.0
    %247 = vmatprep.subr.mxu0 0.0
    %248 = vmatpush2.msra.mxu0 0.0
    %249 = vmatprep.subr.mxu0 0.0
    %250 = vmatpush2.msra.mxu0 0.0
    %251 = vmatprep.mubr.f32.mxu0 0.0
    %252 = vmatmul.mubr.f32.gmra.mxu0 %v176
    %v253 = vpop.f32.mrf.mxu0
    %v254 = vadd.f32 %v157, %v253
    %v255 = vpop.f32.mrf.mxu0
    %256 = vmatprep.mubr.f32.mxu0 0.0
    %257 = vmatmul.mubr.f32.gmra.mxu0 %v179
    %v258 = vpop.f32.mrf.mxu0
    %v259 = vadd.f32 %v162, %v258
    %v260 = vpop.f32.mrf.mxu0
    %261 = vmatprep.mubr.f32.mxu0 0.0
    %262 = vmatmul.mubr.f32.gmra.mxu0 %v182
    %v263 = vpop.f32.mrf.mxu0
    %v264 = vadd.f32 %v167, %v263
    %v265 = vpop.f32.mrf.mxu0
    %266 = vmatprep.mubr.f32.mxu0 0.0
    %267 = vmatmul.mubr.f32.gmra.mxu0 %v185
    %v268 = vpop.f32.mrf.mxu0
    %v269 = vadd.f32 %v172, %v268
    %v270 = vpop.f32.mrf.mxu0
    %271 = vdwg.mxu0
    %v272 = vxor.u32 %v254, 2147483648
    %v273 = vxor.u32 %v259, 2147483648
    %v274 = vxor.u32 %v264, 2147483648
    %v275 = vxor.u32 %v269, 2147483648
    %v276 = vmul.f32 %v272, 1.442695
    %v277 = vpow.pop %v276
    %v278 = vmul.f32 %v273, 1.442695
    %v279 = vpow.pop %v278
    %v280 = vmul.f32 %v274, 1.442695
    %v281 = vpow.pop %v280
    %v282 = vmul.f32 %v275, 1.442695
    %v283 = vpow.pop %v282
    %v284 = vadd.f32 %v277, 1.0
    %v285 = vadd.f32 %v279, 1.0
    %v286 = vadd.f32 %v281, 1.0
    %v287 = vadd.f32 %v283, 1.0
    %v288 = vrcp.pop %v284
    %v289 = vmul.f32 1.0, %v288
    %v290 = vrcp.pop %v285
    %v291 = vmul.f32 1.0, %v290
    %v292 = vrcp.pop %v286
    %v293 = vmul.f32 1.0, %v292
    %v294 = vrcp.pop %v287
    %v295 = vmul.f32 1.0, %v294
    %v296 = vmul.f32 %v254, %v289
    %v297 = vmul.f32 %v259, %v291
    %v298 = vmul.f32 %v264, %v293
    %v299 = vmul.f32 %v269, %v295
    %v300 = vld [vmem:[%s5] sm:$0xff]
    %v301 = vld [vmem:[%s5 + $0x8] sm:$0xff]
    %v302 = vld [vmem:[%s5 + $0x10] sm:$0xff]
    %v303 = vld [vmem:[%s5 + $0x18] sm:$0xff]
    %v304 = vld [vmem:[#allocation2] sm:$0x1]
    %306 = vset.pattern.permute.xlu0 0
    %307 = vperm.xlu0 %306, %v300
    %v308 = vpop.permute.xlu0 %307
    %311 = vset.pattern.permute.xlu0 0
    %312 = vperm.xlu0 %311, %v301
    %v313 = vpop.permute.xlu0 %312
    %316 = vset.pattern.permute.xlu0 0
    %317 = vperm.xlu0 %316, %v302
    %v318 = vpop.permute.xlu0 %317
    %321 = vset.pattern.permute.xlu0 0
    %322 = vperm.xlu0 %321, %v303
    %v323 = vpop.permute.xlu0 %322
    %v325 = vmul.f32 %v308, %v296
    %v326 = vmul.f32 %v313, %v297
    %v327 = vmul.f32 %v318, %v298
    %v328 = vmul.f32 %v323, %v299
    %vm329 = vcmask 64512
    %v330 = vsel %vm329, %v325, 0.0
    %v331 = vsel %vm329, %v326, 0.0
    %v332 = vadd.f32 %v330, %v331
    %v333 = vsel %vm329, %v327, 0.0
    %v334 = vadd.f32 %v332, %v333
    %v335 = vsel %vm329, %v328, 0.0
    %v336 = vadd.f32 %v334, %v335
    %v337 = vrot.slane %v336, 4
    %v338 = vadd.f32 %v336, %v337
    %v339 = vrot.slane %v338, 2
    %v340 = vadd.f32 %v338, %v339
    %v341 = vrot.slane %v340, 1
    %v342 = vadd.f32 %v340, %v341
    %344 = vset.pattern.permute.xlu0 0
    %345 = vperm.xlu0 %344, %v304
    %v346 = vpop.permute.xlu0 %345
    %v348 = vlaneseq
    %v349 = vshrl.u32 %v348, 7
    %v350 = vsub.s32 0, %v349
    %v351 = vrot.slane %v346, %v350
    %v352 = vadd.f32 %v342, %v351
    %vm353 = vcmask 57344
    %354 = vst.msk [vmem:[#allocation3] sm:$0x1] %vm353, %v352
    // Predicated region
    $region30: #{tpu_custom_call.1} parent=1 // pred_check
      _
    $region31: #{tpu_custom_call.1} parent=1 // pred_check_branch
      %356 = sbr.rel (0) target = $region33
    $region32: #{tpu_custom_call.1} parent=1 // pred_region
      %s358 = ssub.s32 16, 16
      %359 = vsyncadd [#allocation4], %s358
      %s361 = sshll.u32 [#allocation3], 4
      %s362 = int_to_ptr.vmem [resolvable:$true] %s361
      %364 = dma.vmem_to_hbm [thread:$0]  %s362, 16, %s7, [#allocation4]
    $region33: #{tpu_custom_call.1} parent=1 // pred_fallthru
      _
    // Predicated region
    $region34: #{tpu_custom_call.1} parent=1 // pred_check
      _
    $region35: #{tpu_custom_call.1} parent=1 // pred_check_branch
      %366 = sbr.rel (0) target = $region37
    $region36: #{tpu_custom_call.1} parent=1 // pred_region
      %367 = dma.done [#allocation4], 16
    $region37: #{tpu_custom_call.1} parent=1 // pred_fallthru
      _
    %368 = vsyncpa [#allocation4], 1

</llo_original>
